<compile_context>
chip_gen: v7x
topology: tpu7x:2x2x1
jax: 0.10.0
libtpu: 0.0.40
codegen_flags: <defaults>
</compile_context>

<pallas_src>
import functools

import jax
import jax.numpy as jnp
from jax.experimental import pallas as pl
from jax.experimental.pallas import tpu as pltpu


def _iou_loss_kernel(p_ref, t_ref, out_ref, acc_ref, *, n_valid_elems):
    """One grid step over a (rows, 128) block of the flattened [N, 4] boxes.

    Lane layout of every 128-lane row: [x1, y1, x2, y2] * 32 boxes, i.e. the per-box loss
    is produced at lanes with (lane % 4) == 0; the other lanes compute redundant garbage
    that never reaches the accumulator (masked select).
    """
    i = pl.program_id(0)

    @pl.when(i == 0)
    def _():
        acc_ref[...] = jnp.zeros_like(acc_ref)

    p = p_ref[...]                                    # (rows, 128) f32
    t = t_ref[...]
    rows, lanes = p.shape                             # static python ints

    lane = jax.lax.broadcasted_iota(jnp.int32, (rows, lanes), 1)
    c = lane % 4                                      # coordinate index inside a box
    is_lt = c < 2                                     # lanes holding x1 / y1

    # lt = max(p_xy1, t_xy1) at c in {0,1};  rb = min(p_xy2, t_xy2) at c in {2,3}.
    m = jnp.where(is_lt, jnp.maximum(p, t), jnp.minimum(p, t))

    # Lane rotation bringing lane l+2 down to lane l (shift = L-2, jnp.roll semantics).
    # Wrap-around only lands on c in {2,3} lanes, which are never read below.
    left2, left1 = lanes - 2, lanes - 1
    d = jnp.maximum(pltpu.roll(m, shift=left2, axis=1) - m, 0.0)    # c0: iw, c1: ih
    pd = pltpu.roll(p, shift=left2, axis=1) - p                     # c0: pw, c1: ph
    td = pltpu.roll(t, shift=left2, axis=1) - t                     # c0: tw, c1: th

    inter = d * pltpu.roll(d, shift=left1, axis=1)                  # c0: iw * ih
    area_p = pd * pltpu.roll(pd, shift=left1, axis=1)               # c0: pw * ph
    area_t = td * pltpu.roll(td, shift=left1, axis=1)               # c0: tw * th

    union = area_p + area_t - inter
    iou = jnp.maximum(inter * pl.reciprocal(union, approx=False), 1e-6)
    loss = -jnp.log(iou)

    # Keep only real boxes: c == 0 lanes whose flat element index is inside the original
    # array.  This masks the ragged (<32 box) tail and any partial last block in one shot;
    # NaN/inf on garbage lanes is discarded by the select before it touches the accumulator.
    row = jax.lax.broadcasted_iota(jnp.int32, (rows, lanes), 0)
    flat = (i * rows + row) * lanes + lane
    valid = (c == 0) & (flat < n_valid_elems)
    acc_ref[...] += jnp.where(valid, loss, 0.0)

    @pl.when(i == pl.num_programs(0) - 1)
    def _():
        out_ref[...] = jnp.full((1, lanes), jnp.sum(acc_ref[...]), dtype=jnp.float32)


def iou_loss(pred, target, reduction="mean", boxes_per_tile=65536):
    """pred, target: [N, 4] float32 boxes (x1, y1, x2, y2).  Returns a scalar loss."""
    pred = jnp.asarray(pred, jnp.float32)
    target = jnp.asarray(target, jnp.float32)
    n = pred.shape[0]
    assert pred.shape == (n, 4) and target.shape == (n, 4)
    assert reduction in ("mean", "sum"), \
        "only 'mean'/'sum' implemented"  # TODO(synk): reduction='none' (per-box output)

    # Free, layout-preserving reshape to a lane-dense (rows, 128) view.  Only when N is not
    # a multiple of 32 do we pad (<32 zero boxes, masked in-kernel) -- the single remaining
    # wrapper copy; in the aligned case there is zero HBM traffic outside the kernel.
    n32 = ((n + 31) // 32) * 32
    if n32 != n:
        pad = ((0, n32 - n), (0, 0))
        pred = jnp.pad(pred, pad)
        target = jnp.pad(target, pad)
    m_rows = n32 // 32                        # == 4 * n32 / 128
    p2 = pred.reshape(m_rows, 128)
    t2 = target.reshape(m_rows, 128)

    # Default: 65536 boxes per step -> (2048, 128) blocks = 1 MiB per input; double-buffered
    # inputs + the dense accumulator stay ~5 MiB of VMEM on every chip generation.
    block_rows = max(8, ((boxes_per_tile * 4) // 128 // 8) * 8)
    if m_rows <= block_rows:
        block_rows = m_rows                   # single block == full array (any row count ok)
    num_tiles = pl.cdiv(m_rows, block_rows)

    kernel = functools.partial(_iou_loss_kernel, n_valid_elems=4 * n)

    partial_sum = pl.pallas_call(
        kernel,
        out_shape=jax.ShapeDtypeStruct((1, 128), jnp.float32),
        grid=(num_tiles,),
        in_specs=[
            pl.BlockSpec((block_rows, 128), lambda i: (i, 0)),
            pl.BlockSpec((block_rows, 128), lambda i: (i, 0)),
        ],
        out_specs=pl.BlockSpec((1, 128), lambda i: (0, 0)),
        scratch_shapes=[pltpu.VMEM((block_rows, 128), jnp.float32)],
        compiler_params=pltpu.CompilerParams(
            dimension_semantics=("arbitrary",)),
        cost_estimate=pl.CostEstimate(
            flops=30 * 4 * n32,
            transcendentals=2 * 4 * n32,
            bytes_accessed=2 * 16 * n32 + 512),
    )(p2, t2)

    total = partial_sum[0, 0]
    if reduction == "sum":
        return total
    return total / jnp.float32(n)


def _iou_loss_ref(pred, target):
    # Pure-JAX reference of the PyTorch semantics (per-element loss).
    px1, py1, px2, py2 = pred[:, 0], pred[:, 1], pred[:, 2], pred[:, 3]
    tx1, ty1, tx2, ty2 = target[:, 0], target[:, 1], target[:, 2], target[:, 3]
    area_p = (px2 - px1) * (py2 - py1)
    area_t = (tx2 - tx1) * (ty2 - ty1)
    w = jnp.maximum(jnp.minimum(px2, tx2) - jnp.maximum(px1, tx1), 0.0)
    h = jnp.maximum(jnp.minimum(py2, ty2) - jnp.maximum(py1, ty1), 0.0)
    inter = w * h
    iou = jnp.maximum(inter / (area_p + area_t - inter), 1e-6)
    return -jnp.log(iou)


if __name__ == "__main__":
    key = jax.random.PRNGKey(0)

    def make_boxes(k, n):
        k1, k2 = jax.random.split(k)
        xy = jax.random.uniform(k1, (n, 2), jnp.float32, 0.0, 0.5)
        wh = jax.random.uniform(k2, (n, 2), jnp.float32, 0.1, 0.5)
        return jnp.concatenate([xy, xy + wh], axis=1)      # well-formed [n, 4] boxes

    # (n, boxes_per_tile): single-block path (8), ragged N with a 3-step grid and a partial
    # last block (600 @ 128), ragged N on the default large tile (600 @ 65536), and an
    # aligned multi-tile reduction (2048 @ 512, grid of 4).
    cases = [(8, 65536), (600, 128), (600, 65536), (2048, 512)]
    for n, bpt in cases:
        kp, kt, key = jax.random.split(key, 3)
        pred = make_boxes(kp, n)
        target = make_boxes(kt, n)

        loss = iou_loss(pred, target, reduction="mean", boxes_per_tile=bpt)
        jax.block_until_ready(loss)
        ref = jnp.mean(_iou_loss_ref(pred, target))
        assert jnp.allclose(loss, ref, rtol=1e-5, atol=1e-5), (n, bpt, loss, ref)

    # Quick 'sum' reduction check on the small case.
    kp, kt, key = jax.random.split(key, 3)
    pred, target = make_boxes(kp, 8), make_boxes(kt, 8)
    loss_sum = iou_loss(pred, target, reduction="sum")
    jax.block_until_ready(loss_sum)
    ref_sum = jnp.sum(_iou_loss_ref(pred, target))
    assert jnp.allclose(loss_sum, ref_sum, rtol=1e-5, atol=1e-5), (loss_sum, ref_sum)

    print("KERNEL_OK")
</pallas_src>

<mosaic_0001>
module attributes {stable_mosaic.version = 11 : i64} {
  func.func @_iou_loss_kernel(%arg0: i32, %arg1: memref<1x128xf32, #tpu.memory_space<vmem>>, %arg2: memref<1x128xf32, #tpu.memory_space<vmem>>, %arg3: memref<1x128xf32, #tpu.memory_space<vmem>>, %arg4: memref<1x128xf32, #tpu.memory_space<vmem>>) attributes {dimension_semantics = [#tpu.dimension_semantics<arbitrary>], iteration_bounds = array<i64: 1>, scalar_prefetch = 0 : i64, scratch_operands = 1 : i64, tpu.core_type = #tpu.core_type<tc>, window_params = [{transform_indices = @transform_0, window_bounds = array<i64: 1, 128>}, {transform_indices = @transform_1, window_bounds = array<i64: 1, 128>}, {pipeline_mode = #tpu.pipeline_mode<synchronous>, transform_indices = @transform_2, window_bounds = array<i64: 1, 128>}]} {
    %c0_i32 = arith.constant 0 : i32
    %0 = arith.cmpi eq, %arg0, %c0_i32 : i32
    %1 = arith.extui %0 : i1 to i32
    %c0_i32_0 = arith.constant 0 : i32
    %2 = arith.cmpi ne, %1, %c0_i32_0 : i32
    scf.if %2 {
      %cst_23 = arith.constant 0.000000e+00 : f32
      %70 = vector.broadcast %cst_23 : f32 to vector<1x128xf32>
      %c0_24 = arith.constant 0 : index
      %c0_25 = arith.constant 0 : index
      %71 = vector.load %arg4[%c0_24, %c0_25] : memref<1x128xf32, #tpu.memory_space<vmem>>, vector<1x128xf32>
      tpu.vector_store %arg4[%c0_24, %c0_25], %70 {strides = array<i32>} : memref<1x128xf32, #tpu.memory_space<vmem>>, vector<1x128xf32>,
    } else {
    }
    %c0 = arith.constant 0 : index
    %c0_1 = arith.constant 0 : index
    %3 = vector.load %arg1[%c0, %c0_1] : memref<1x128xf32, #tpu.memory_space<vmem>>, vector<1x128xf32>
    %c0_2 = arith.constant 0 : index
    %c0_3 = arith.constant 0 : index
    %4 = vector.load %arg2[%c0_2, %c0_3] : memref<1x128xf32, #tpu.memory_space<vmem>>, vector<1x128xf32>
    %5 = tpu.iota {dimensions = array<i32: 1>} : vector<1x128xi32>
    %c4_i32 = arith.constant 4 : i32
    %c0_i32_4 = arith.constant 0 : i32
    %6 = arith.cmpi eq, %c4_i32, %c0_i32_4 : i32
    %c1_i32 = arith.constant 1 : i32
    %7 = arith.select %6, %c1_i32, %c4_i32 : i32
    %8 = vector.broadcast %7 : i32 to vector<1x128xi32>
    %9 = arith.remsi %5, %8 : vector<1x128xi32>
    %c0_i32_5 = arith.constant 0 : i32
    %10 = vector.broadcast %c0_i32_5 : i32 to vector<1x128xi32>
    %11 = arith.cmpi ne, %9, %10 : vector<1x128xi32>
    %c0_i32_6 = arith.constant 0 : i32
    %12 = vector.broadcast %c0_i32_6 : i32 to vector<1x128xi32>
    %13 = arith.cmpi slt, %9, %12 : vector<1x128xi32>
    %c0_i32_7 = arith.constant 0 : i32
    %14 = arith.cmpi slt, %7, %c0_i32_7 : i32
    %15 = vector.broadcast %14 : i1 to vector<1x128xi1>
    %16 = vector.broadcast %15 : vector<1x128xi1> to vector<1x128xi1>
    %17 = arith.xori %13, %16 : vector<1x128xi1>
    %18 = arith.andi %17, %11 : vector<1x128xi1>
    %19 = vector.broadcast %7 : i32 to vector<1x128xi32>
    %20 = arith.addi %9, %19 : vector<1x128xi32>
    %21 = arith.select %18, %20, %9 : vector<1x128xi1>, vector<1x128xi32>
    %c2_i32 = arith.constant 2 : i32
    %22 = vector.broadcast %c2_i32 : i32 to vector<1x128xi32>
    %23 = arith.cmpi slt, %21, %22 : vector<1x128xi32>
    %24 = arith.maximumf %3, %4 : vector<1x128xf32>
    %25 = arith.minimumf %3, %4 : vector<1x128xf32>
    %26 = arith.select %23, %24, %25 : vector<1x128xi1>, vector<1x128xf32>
    %c126_i32 = arith.constant 126 : i32
    %27 = tpu.dynamic_rotate %26 by %c126_i32 dim 1 : vector<1x128xf32>, i32 -> vector<1x128xf32>
    %28 = arith.subf %27, %26 : vector<1x128xf32>
    %cst = arith.constant 0.000000e+00 : f32
    %29 = vector.broadcast %cst : f32 to vector<1x128xf32>
    %30 = arith.maximumf %28, %29 : vector<1x128xf32>
    %c126_i32_8 = arith.constant 126 : i32
    %31 = tpu.dynamic_rotate %3 by %c126_i32_8 dim 1 : vector<1x128xf32>, i32 -> vector<1x128xf32>
    %32 = arith.subf %31, %3 : vector<1x128xf32>
    %c126_i32_9 = arith.constant 126 : i32
    %33 = tpu.dynamic_rotate %4 by %c126_i32_9 dim 1 : vector<1x128xf32>, i32 -> vector<1x128xf32>
    %34 = arith.subf %33, %4 : vector<1x128xf32>
    %c127_i32 = arith.constant 127 : i32
    %35 = tpu.dynamic_rotate %30 by %c127_i32 dim 1 : vector<1x128xf32>, i32 -> vector<1x128xf32>
    %36 = arith.mulf %30, %35 : vector<1x128xf32>
    %c127_i32_10 = arith.constant 127 : i32
    %37 = tpu.dynamic_rotate %32 by %c127_i32_10 dim 1 : vector<1x128xf32>, i32 -> vector<1x128xf32>
    %38 = arith.mulf %32, %37 : vector<1x128xf32>
    %c127_i32_11 = arith.constant 127 : i32
    %39 = tpu.dynamic_rotate %34 by %c127_i32_11 dim 1 : vector<1x128xf32>, i32 -> vector<1x128xf32>
    %40 = arith.mulf %34, %39 : vector<1x128xf32>
    %41 = arith.addf %38, %40 : vector<1x128xf32>
    %42 = arith.subf %41, %36 : vector<1x128xf32>
    %43 = tpu.reciprocal %42 : vector<1x128xf32> -> vector<1x128xf32>
    %44 = arith.mulf %36, %43 : vector<1x128xf32>
    %cst_12 = arith.constant 9.99999997E-7 : f32
    %45 = vector.broadcast %cst_12 : f32 to vector<1x128xf32>
    %46 = arith.maximumf %44, %45 : vector<1x128xf32>
    %47 = math.log %46 : vector<1x128xf32>
    %cst_13 = arith.constant 0.000000e+00 : f32
    %48 = vector.broadcast %cst_13 : f32 to vector<1x128xf32>
    %49 = arith.subf %48, %47 : vector<1x128xf32>
    %50 = tpu.iota {dimensions = array<i32: 0>} : vector<1x128xi32>
    %c1_i32_14 = arith.constant 1 : i32
    %51 = arith.muli %arg0, %c1_i32_14 : i32
    %52 = vector.broadcast %51 : i32 to vector<1x128xi32>
    %53 = arith.addi %52, %50 : vector<1x128xi32>
    %c128_i32 = arith.constant 128 : i32
    %54 = vector.broadcast %c128_i32 : i32 to vector<1x128xi32>
    %55 = arith.muli %53, %54 : vector<1x128xi32>
    %56 = arith.addi %55, %5 : vector<1x128xi32>
    %c0_i32_15 = arith.constant 0 : i32
    %57 = vector.broadcast %c0_i32_15 : i32 to vector<1x128xi32>
    %58 = arith.cmpi eq, %21, %57 : vector<1x128xi32>
    %c32_i32 = arith.constant 32 : i32
    %59 = vector.broadcast %c32_i32 : i32 to vector<1x128xi32>
    %60 = arith.cmpi slt, %56, %59 : vector<1x128xi32>
    %61 = arith.andi %58, %60 : vector<1x128xi1>
    %c0_16 = arith.constant 0 : index
    %c0_17 = arith.constant 0 : index
    %62 = vector.load %arg4[%c0_16, %c0_17] : memref<1x128xf32, #tpu.memory_space<vmem>>, vector<1x128xf32>
    %cst_18 = arith.constant 0.000000e+00 : f32
    %63 = vector.broadcast %cst_18 : f32 to vector<1x128xf32>
    %64 = arith.select %61, %49, %63 : vector<1x128xi1>, vector<1x128xf32>
    %65 = arith.addf %62, %64 : vector<1x128xf32>
    %c0_19 = arith.constant 0 : index
    %c0_20 = arith.constant 0 : index
    %66 = vector.load %arg4[%c0_19, %c0_20] : memref<1x128xf32, #tpu.memory_space<vmem>>, vector<1x128xf32>
    tpu.vector_store %arg4[%c0_19, %c0_20], %65 {strides = array<i32>} : memref<1x128xf32, #tpu.memory_space<vmem>>, vector<1x128xf32>,
    %c0_i32_21 = arith.constant 0 : i32
    %67 = arith.cmpi eq, %arg0, %c0_i32_21 : i32
    %68 = arith.extui %67 : i1 to i32
    %c0_i32_22 = arith.constant 0 : i32
    %69 = arith.cmpi ne, %68, %c0_i32_22 : i32
    scf.if %69 {
      %c0_23 = arith.constant 0 : index
      %c0_24 = arith.constant 0 : index
      %70 = vector.load %arg4[%c0_23, %c0_24] : memref<1x128xf32, #tpu.memory_space<vmem>>, vector<1x128xf32>
      %71 = vector.shape_cast %70 : vector<1x128xf32> to vector<1x1x128xf32>
      %cst_25 = arith.constant dense<0.000000e+00> : vector<1xf32>
      %72 = vector.multi_reduction <add>, %71, %cst_25 [1, 2] : vector<1x1x128xf32> to vector<1xf32>
      %73 = vector.shape_cast %72 : vector<1xf32> to vector<1x1x1xf32>
      %74 = vector.extract %73[0, 0, 0] : f32 from vector<1x1x1xf32>
      %75 = vector.broadcast %74 : f32 to vector<1x128xf32>
      %c0_26 = arith.constant 0 : index
      %c0_27 = arith.constant 0 : index
      %76 = vector.load %arg3[%c0_26, %c0_27] : memref<1x128xf32, #tpu.memory_space<vmem>>, vector<1x128xf32>
      tpu.vector_store %arg3[%c0_26, %c0_27], %75 {strides = array<i32>} : memref<1x128xf32, #tpu.memory_space<vmem>>, vector<1x128xf32>,
    } else {
    }
    return
  }
  func.func @transform_0(%arg0: i32) -> (i32, i32) {
    %c0_i32 = arith.constant 0 : i32
    %c0_i32_0 = arith.constant 0 : i32
    return %arg0, %c0_i32 : i32, i32
  }
  func.func @transform_1(%arg0: i32) -> (i32, i32) {
    %c0_i32 = arith.constant 0 : i32
    %c0_i32_0 = arith.constant 0 : i32
    return %arg0, %c0_i32 : i32, i32
  }
  func.func @transform_2(%arg0: i32) -> (i32, i32) {
    %c0_i32 = arith.constant 0 : i32
    %c0_i32_0 = arith.constant 0 : i32
    %c0_i32_1 = arith.constant 0 : i32
    return %c0_i32, %c0_i32_0 : i32, i32
  }
}

</mosaic_0001>

<llo_original>
// kernel: tpu_custom_call.1
$region0: #{tpu_custom_call.1}
  #allocation0 [shape = 'u32[]', space=smem, size = 0x4, offset = 0x4, fixed_abs, tag = 'smem constant byte address 0x4 - core index']
  #allocation1 [shape = 'u32[144,128]{1,0:T(1,128)}', space=vmem, size = 0x12000, scoped, tag = 'internal scratch']
  #allocation2 [shape = 'f32[1,128]{1,0:T(1,128)}', space=vmem, size = 0x200, scoped, tag = 'scratch operand']
  %s0 = inlined_call_operand.hbm [shape: f32[1,128], index: 0, kind: input, shape index: {}]
  %s1 = inlined_call_operand.vmem [shape: f32[1,128], index: 1, kind: input, shape index: {}]
  %s2 = inlined_call_operand.hbm [shape: f32[1,128], index: 2, kind: output, shape index: {}]
  %s3 = sld [smem:[#allocation0]]
  $region30: #{tpu_custom_call.1} parent=0
    _
  %s5 = ssub.s32 1, %s3
  %s6 = scalar_select 0, %s5, %s3
  $region1: #{tpu_custom_call.1} parent=0
    #allocation3 [shape = 'u8[512]{0}', space=vmem, size = 0x400, scoped, tag = 'input window, operand 0, single buffered']
    #allocation4 [shape = 's32[1]{0}', space=sflag, size = 0x4, scoped, tag = 'scoped memory for tpu_custom_call.1']
    #allocation5 [shape = 's32[1]{0}', space=sflag, size = 0x4, scoped, tag = 'scoped memory for tpu_custom_call.1']
    #allocation6 [shape = 'u8[512]{0}', space=vmem, size = 0x400, scoped, tag = 'output window, operand 0, single buffered']
    %7 = vsyncpa [#allocation4], 0
    %8 = vsyncpa [#allocation5], 0
    // Predicated region
    $region2: #{tpu_custom_call.1} parent=1 // pred_check
      _
    $region3: #{tpu_custom_call.1} parent=1 // pred_check_branch
      %10 = sbr.rel (0) target = $region5
    $region4: #{tpu_custom_call.1} parent=1 // pred_region
      %s12 = ssub.s32 16, 16
      %13 = vsyncadd [#allocation4], %s12
      %s15 = sshll.u32 [#allocation3], 4
      %s16 = int_to_ptr.vmem [resolvable:$true] %s15
      %18 = dma.hbm_to_vmem [thread:$0]  %s0, 16, %s16, [#allocation4]
    $region5: #{tpu_custom_call.1} parent=1 // pred_fallthru
      _
    // Predicated region
    $region6: #{tpu_custom_call.1} parent=1 // pred_check
      _
    $region7: #{tpu_custom_call.1} parent=1 // pred_check_branch
      %20 = sbr.rel (0) target = $region9
    $region8: #{tpu_custom_call.1} parent=1 // pred_region
      _
    $region9: #{tpu_custom_call.1} parent=1 // pred_fallthru
      _
    // Predicated region
    $region10: #{tpu_custom_call.1} parent=1 // pred_check
      _
    $region11: #{tpu_custom_call.1} parent=1 // pred_check_branch
      %22 = sbr.rel (0) target = $region13
    $region12: #{tpu_custom_call.1} parent=1 // pred_region
      %23 = dma.done [#allocation4], 16
    $region13: #{tpu_custom_call.1} parent=1 // pred_fallthru
      _
    %p24 = scmp.eq.s32.totalorder 0, 0
    // Predicated region
    $region14: #{tpu_custom_call.1} parent=1 // pred_check
      %p25 = pneg %p24
    $region15: #{tpu_custom_call.1} parent=1 // pred_check_branch
      %27 = sbr.rel (%p25) target = $region17
    $region16: #{tpu_custom_call.1} parent=1 // pred_region
      %28 = vst [vmem:[#allocation2] sm:$0x1] 0.0
    $region17: #{tpu_custom_call.1} parent=1 // pred_fallthru
      _
    %v29 = vld [vmem:[#allocation3] sm:$0x1]
    %v30 = vld [vmem:[%s1] sm:$0x1]
    %v31 = vlaneseq
    %v32 = vand.u32 %v31, 127
    %vm33 = vcmp.lt.s32.totalorder %v32, 0
    %v34 = vsub.s32 0, %v32
    %v35 = vsel %vm33, %v34, %v32
    %v36 = vshrl.u32 %v35, 2
    %v37 = vand.u32 %v35, 3
    %v38 = vsub.s32 0, %v37
    %v39 = vsel %vm33, %v38, %v37
    %vm40 = vcmp.ne.s32.totalorder %v39, 0
    %vm41 = vcmp.lt.s32.totalorder %v39, 0
    %vm42 = vmand %vm41, %vm40
    %v43 = vadd.s32 %v39, 4
    %v44 = vsel %vm42, %v43, %v39
    %vm45 = vcmp.lt.s32.totalorder %v44, 2
    %v46 = vmax.f32 %v29, %v30
    %v47 = vmin.f32 %v29, %v30
    %v48 = vsel %vm45, %v46, %v47
    %49 = vrot.lane.b32.xlu0 %v48, 126
    %v50 = vpop.permute.xlu0 %49
    %v51 = vsub.f32 %v50, %v48
    %v52 = vmax.f32 %v51, 0.0
    %53 = vrot.lane.b32.xlu0 %v29, 126
    %v54 = vpop.permute.xlu0 %53
    %v55 = vsub.f32 %v54, %v29
    %56 = vrot.lane.b32.xlu0 %v30, 126
    %v57 = vpop.permute.xlu0 %56
    %v58 = vsub.f32 %v57, %v30
    %59 = vrot.lane.b32.xlu0 %v52, 127
    %v60 = vpop.permute.xlu0 %59
    %v61 = vmul.f32 %v52, %v60
    %62 = vrot.lane.b32.xlu0 %v55, 127
    %v63 = vpop.permute.xlu0 %62
    %v64 = vmul.f32 %v55, %v63
    %65 = vrot.lane.b32.xlu0 %v58, 127
    %v66 = vpop.permute.xlu0 %65
    %v67 = vmul.f32 %v58, %v66
    %v68 = vadd.f32 %v64, %v67
    %v69 = vsub.f32 %v68, %v61
    %v70 = vrcp.pop %v69
    %v71 = vmul.f32 %v61, %v70
    %v72 = vmax.f32 %v71, 1e-06
    %v73 = vlog2.pop %v72
    %v74 = vmul.f32 %v73, 0.6931472
    %v75 = vsub.f32 0.0, %v74
    %v76 = vlaneseq
    %v77 = vshrl.u32 %v76, 7
    %v78 = vstv 0
    %v79 = vadd.s32 %v78, %v77
    %v80 = vmul.u32 %v79, 128
    %v81 = vadd.s32 %v80, %v32
    %vm82 = vcmp.eq.s32.totalorder %v44, 0
    %vm83 = vcmp.lt.s32.totalorder %v81, 32
    %vm84 = vmand %vm82, %vm83
    %v85 = vld [vmem:[#allocation2] sm:$0x1]
    %v86 = vsel %vm84, %v75, 0.0
    %v87 = vadd.f32 %v85, %v86
    %88 = vst [vmem:[#allocation2] sm:$0x1] %v87
    // Predicated region
    $region18: #{tpu_custom_call.1} parent=1 // pred_check
      %p89 = pneg %p24
    $region19: #{tpu_custom_call.1} parent=1 // pred_check_branch
      %91 = sbr.rel (%p89) target = $region21
    $region20: #{tpu_custom_call.1} parent=1 // pred_region
      %v92 = vld [vmem:[#allocation2] sm:$0x1]
      %vm93 = vcmask 1040384
      %v94 = vsel %vm93, %v92, 0.0
      %95 = vadd.xlane.f32.xlu0 %v94
      %v96 = vpop.xlane.xlu0 %95
      %v97 = vrot.slane %v96, 4
      %v98 = vadd.f32 %v96, %v97
      %v99 = vrot.slane %v98, 2
      %v100 = vadd.f32 %v98, %v99
      %v101 = vrot.slane %v100, 1
      %v102 = vadd.f32 %v100, %v101
      %s103 = vtos %v102
      %v104 = vstv %s103
      %105 = vst [vmem:[#allocation6] sm:$0x1] %v104
    $region21: #{tpu_custom_call.1} parent=1 // pred_fallthru
      _
    // Predicated region
    $region22: #{tpu_custom_call.1} parent=1 // pred_check
      _
    $region23: #{tpu_custom_call.1} parent=1 // pred_check_branch
      %107 = sbr.rel (0) target = $region25
    $region24: #{tpu_custom_call.1} parent=1 // pred_region
      %s109 = ssub.s32 16, 16
      %110 = vsyncadd [#allocation5], %s109
      %s112 = sshll.u32 [#allocation6], 4
      %s113 = int_to_ptr.vmem [resolvable:$true] %s112
      %115 = dma.vmem_to_hbm [thread:$0]  %s113, 16, %s2, [#allocation5]
    $region25: #{tpu_custom_call.1} parent=1 // pred_fallthru
      _
    // Predicated region
    $region26: #{tpu_custom_call.1} parent=1 // pred_check
      _
    $region27: #{tpu_custom_call.1} parent=1 // pred_check_branch
      %117 = sbr.rel (0) target = $region29
    $region28: #{tpu_custom_call.1} parent=1 // pred_region
      %118 = dma.done [#allocation5], 16
    $region29: #{tpu_custom_call.1} parent=1 // pred_fallthru
      _
    %119 = vsyncpa [#allocation4], 1
    %120 = vsyncpa [#allocation5], 1

</llo_original>
